<compile_context>
chip_gen: v7x
topology: tpu7x:2x2x1
jax: 0.10.0
libtpu: 0.0.40
codegen_flags: <defaults>
</compile_context>

<pallas_src>
import functools

import jax
import jax.numpy as jnp
from jax.experimental import pallas as pl
from jax.experimental.pallas import tpu as pltpu

_LANES = 128


def _round_up(a, b):
    return ((a + b - 1) // b) * b


def _wce_kernel(x_ref, z_ref, w_ref, out_ref, *, tile_rows, valid_rows, need_mask):
    """One row-tile of the weighted BCE-with-logits partial sum.

    x_ref, z_ref : (tile_rows, C) logits / targets (any float dtype)
    w_ref        : (1, C) resident pos_weight (f32), broadcast over rows
    out_ref      : (1, 1, C) per-tile per-class partial sums (f32)
    """
    x = x_ref[...].astype(jnp.float32)
    z = z_ref[...].astype(jnp.float32)
    q = w_ref[...]                     # (1, C) -> broadcasts against (tile_rows, C)

    # q*z*(-log(sigmoid(x))) + (1-z)*(-log(1-sigmoid(x)))
    #   == (1-z)*x + (1 + (q-1)*z) * softplus(-x)
    # with softplus(-x) = max(-x, 0) + log1p(exp(-|x|))   (2 EUP ops / element).
    sp = jnp.maximum(-x, 0.0) + jnp.log1p(jnp.exp(-jnp.abs(x)))
    L = (1.0 - z) * x + (1.0 + (q - 1.0) * z) * sp

    if need_mask:
        # Last row-tile may extend past the true batch: zero those rows.
        row = pl.program_id(0) * tile_rows + jax.lax.broadcasted_iota(
            jnp.int32, L.shape, 0)
        L = jnp.where(row < valid_rows, L, 0.0)

    out_ref[...] = jnp.sum(L, axis=0, keepdims=True).reshape(1, 1, -1)


def weighted_cross_entropy_with_logits(logits, targets, pos_weight, *, tile_rows=None):
    """logits, targets: (B, C) (f32 or bf16 — kept narrow until the kernel);
    pos_weight: (C,). Returns scalar f32 loss = mean over all elements."""
    B, C = logits.shape
    n = B * C
    w = pos_weight.astype(jnp.float32).reshape(1, C)   # tiny, resident in VMEM

    # Size row tiles so a single input block stays <= ~4 MiB (f32 worst case):
    # 2 streams x 2 pipeline buffers ~= 16 MiB, under the 32 MiB limit below.
    lanes_pad = _round_up(C, _LANES)
    if tile_rows is None:
        tile_rows = max(8, (4 * 1024 * 1024) // (lanes_pad * 4))
    if B <= tile_rows:
        tb = B                                           # full-extent block: always legal
    else:
        tb = max(8, (min(tile_rows, B) // 8) * 8)        # sublane-aligned
    num_tiles = (B + tb - 1) // tb
    need_mask = num_tiles * tb > B

    kernel = functools.partial(
        _wce_kernel, tile_rows=tb, valid_rows=B, need_mask=need_mask)

    partial = pl.pallas_call(
        kernel,
        out_shape=jax.ShapeDtypeStruct((num_tiles, 1, C), jnp.float32),
        grid_spec=pltpu.PrefetchScalarGridSpec(
            num_scalar_prefetch=0,
            grid=(num_tiles,),
            in_specs=[
                pl.BlockSpec((tb, C), lambda i: (i, 0)),   # logits  (streamed)
                pl.BlockSpec((tb, C), lambda i: (i, 0)),   # targets (streamed)
                pl.BlockSpec((1, C), lambda i: (0, 0)),    # pos_weight (resident)
            ],
            out_specs=pl.BlockSpec((1, 1, C), lambda i: (i, 0, 0)),
        ),
        compiler_params=pltpu.CompilerParams(
            dimension_semantics=("parallel",),   # independent tiles: megacore-shardable
            vmem_limit_bytes=32 * 1024 * 1024,
        ),
    )(logits, targets, w)

    # Tiny (num_tiles x C) cross-tile reduction + mean divisor outside the kernel.
    return jnp.sum(partial) * (1.0 / float(n))


def _reference(logits, targets, pos_weight):
    # Mirrors the PyTorch module literally (sigmoid + two logs).
    x = jax.nn.sigmoid(logits.astype(jnp.float32))
    z = targets.astype(jnp.float32)
    q = pos_weight.reshape(1, -1).astype(jnp.float32)
    L = q * z * (-jnp.log(x)) + (1.0 - z) * (-jnp.log(1.0 - x))
    return jnp.mean(L)


if __name__ == "__main__":
    key = jax.random.PRNGKey(0)
    k1, k2, k3, k4, k5, k6 = jax.random.split(key, 6)

    # 1) mmimdb-style multi-label setup: small batch, ~23 genre classes
    #    (C not a multiple of 128; single full-extent tile, no masking).
    B, C = 8, 23
    logits = jax.random.normal(k1, (B, C), dtype=jnp.float32)
    targets = (jax.random.uniform(k2, (B, C)) > 0.5).astype(jnp.float32)
    pos_weight = jnp.linspace(0.5, 2.0, C, dtype=jnp.float32)

    loss = weighted_cross_entropy_with_logits(logits, targets, pos_weight)
    jax.block_until_ready(loss)
    ref = _reference(logits, targets, pos_weight)
    assert jnp.allclose(loss, ref, rtol=1e-5, atol=1e-5), (loss, ref)

    # 2) Multi-tile + ragged tail (tile_rows=16 -> 7 tiles covering 112 > 100
    #    rows) to exercise the "parallel" grid and the in-kernel row mask.
    B2, C2 = 100, 23
    logits2 = jax.random.normal(k3, (B2, C2), dtype=jnp.float32)
    targets2 = (jax.random.uniform(k4, (B2, C2)) > 0.5).astype(jnp.float32)
    pos_weight2 = jnp.linspace(0.25, 3.0, C2, dtype=jnp.float32)

    loss2 = weighted_cross_entropy_with_logits(
        logits2, targets2, pos_weight2, tile_rows=16)
    jax.block_until_ready(loss2)
    ref2 = _reference(logits2, targets2, pos_weight2)
    assert jnp.allclose(loss2, ref2, rtol=1e-5, atol=1e-5), (loss2, ref2)

    # 3) bf16 inputs stay narrow all the way to the kernel (upcast in VMEM).
    B3, C3 = 64, 37
    logits3 = jax.random.normal(k5, (B3, C3), dtype=jnp.bfloat16)
    targets3 = (jax.random.uniform(k6, (B3, C3)) > 0.5).astype(jnp.bfloat16)
    pos_weight3 = jnp.linspace(0.5, 1.5, C3, dtype=jnp.float32)

    loss3 = weighted_cross_entropy_with_logits(logits3, targets3, pos_weight3)
    jax.block_until_ready(loss3)
    ref3 = _reference(logits3, targets3, pos_weight3)
    assert jnp.allclose(loss3, ref3, rtol=1e-4, atol=1e-4), (loss3, ref3)

    print("KERNEL_OK")
</pallas_src>

<mosaic_0001>
module attributes {stable_mosaic.version = 11 : i64} {
  func.func @_wce_kernel(%arg0: i32, %arg1: memref<8x23xf32, #tpu.memory_space<vmem>>, %arg2: memref<8x23xf32, #tpu.memory_space<vmem>>, %arg3: memref<1x23xf32, #tpu.memory_space<vmem>>, %arg4: memref<1x1x23xf32, #tpu.memory_space<vmem>>) attributes {dimension_semantics = [#tpu.dimension_semantics<parallel>], iteration_bounds = array<i64: 1>, scalar_prefetch = 0 : i64, scratch_operands = 0 : i64, tpu.core_type = #tpu.core_type<tc>, window_params = [{transform_indices = @transform_0, window_bounds = array<i64: 8, 23>}, {transform_indices = @transform_1, window_bounds = array<i64: 8, 23>}, {pipeline_mode = #tpu.pipeline_mode<synchronous>, transform_indices = @transform_2, window_bounds = array<i64: 1, 23>}, {transform_indices = @transform_3, window_bounds = array<i64: 1, 1, 23>}]} {
    %c0 = arith.constant 0 : index
    %c0_0 = arith.constant 0 : index
    %0 = vector.load %arg1[%c0, %c0_0] : memref<8x23xf32, #tpu.memory_space<vmem>>, vector<8x23xf32>
    %c0_1 = arith.constant 0 : index
    %c0_2 = arith.constant 0 : index
    %1 = vector.load %arg2[%c0_1, %c0_2] : memref<8x23xf32, #tpu.memory_space<vmem>>, vector<8x23xf32>
    %c0_3 = arith.constant 0 : index
    %c0_4 = arith.constant 0 : index
    %2 = vector.load %arg3[%c0_3, %c0_4] : memref<1x23xf32, #tpu.memory_space<vmem>>, vector<1x23xf32>
    %cst = arith.constant 0.000000e+00 : f32
    %3 = vector.broadcast %cst : f32 to vector<8x23xf32>
    %4 = arith.subf %3, %0 : vector<8x23xf32>
    %cst_5 = arith.constant 0.000000e+00 : f32
    %5 = vector.broadcast %cst_5 : f32 to vector<8x23xf32>
    %6 = arith.maximumf %4, %5 : vector<8x23xf32>
    %7 = math.absf %0 : vector<8x23xf32>
    %cst_6 = arith.constant 0.000000e+00 : f32
    %8 = vector.broadcast %cst_6 : f32 to vector<8x23xf32>
    %9 = arith.subf %8, %7 : vector<8x23xf32>
    %10 = math.exp %9 : vector<8x23xf32>
    %11 = math.log1p %10 : vector<8x23xf32>
    %12 = arith.addf %6, %11 : vector<8x23xf32>
    %cst_7 = arith.constant 1.000000e+00 : f32
    %13 = vector.broadcast %cst_7 : f32 to vector<8x23xf32>
    %14 = arith.subf %13, %1 : vector<8x23xf32>
    %15 = arith.mulf %14, %0 : vector<8x23xf32>
    %cst_8 = arith.constant 1.000000e+00 : f32
    %16 = vector.broadcast %cst_8 : f32 to vector<1x23xf32>
    %17 = arith.subf %2, %16 : vector<1x23xf32>
    %18 = vector.broadcast %17 : vector<1x23xf32> to vector<8x23xf32>
    %19 = arith.mulf %18, %1 : vector<8x23xf32>
    %cst_9 = arith.constant 1.000000e+00 : f32
    %20 = vector.broadcast %cst_9 : f32 to vector<8x23xf32>
    %21 = arith.addf %20, %19 : vector<8x23xf32>
    %22 = arith.mulf %21, %12 : vector<8x23xf32>
    %23 = arith.addf %15, %22 : vector<8x23xf32>
    %cst_10 = arith.constant dense<0.000000e+00> : vector<23xf32>
    %24 = vector.multi_reduction <add>, %23, %cst_10 [0] : vector<8x23xf32> to vector<23xf32>
    %25 = vector.shape_cast %24 : vector<23xf32> to vector<1x23xf32>
    %26 = vector.shape_cast %25 : vector<1x23xf32> to vector<1x1x23xf32>
    %c0_11 = arith.constant 0 : index
    %c0_12 = arith.constant 0 : index
    %c0_13 = arith.constant 0 : index
    %27 = vector.load %arg4[%c0_11, %c0_12, %c0_13] : memref<1x1x23xf32, #tpu.memory_space<vmem>>, vector<1x1x23xf32>
    tpu.vector_store %arg4[%c0_11, %c0_12, %c0_13], %26 {strides = array<i32>} : memref<1x1x23xf32, #tpu.memory_space<vmem>>, vector<1x1x23xf32>,
    return
  }
  func.func @transform_0(%arg0: i32) -> (i32, i32) {
    %c0_i32 = arith.constant 0 : i32
    %c0_i32_0 = arith.constant 0 : i32
    return %arg0, %c0_i32 : i32, i32
  }
  func.func @transform_1(%arg0: i32) -> (i32, i32) {
    %c0_i32 = arith.constant 0 : i32
    %c0_i32_0 = arith.constant 0 : i32
    return %arg0, %c0_i32 : i32, i32
  }
  func.func @transform_2(%arg0: i32) -> (i32, i32) {
    %c0_i32 = arith.constant 0 : i32
    %c0_i32_0 = arith.constant 0 : i32
    %c0_i32_1 = arith.constant 0 : i32
    return %c0_i32, %c0_i32_0 : i32, i32
  }
  func.func @transform_3(%arg0: i32) -> (i32, i32, i32) {
    %c0_i32 = arith.constant 0 : i32
    %c0_i32_0 = arith.constant 0 : i32
    %c0_i32_1 = arith.constant 0 : i32
    return %arg0, %c0_i32, %c0_i32_0 : i32, i32, i32
  }
}

</mosaic_0001>

<llo_original>
// kernel: tpu_custom_call.1
$region0: #{tpu_custom_call.1}
  #allocation0 [shape = 'u32[]', space=smem, size = 0x4, offset = 0x4, fixed_abs, tag = 'smem constant byte address 0x4 - core index']
  #allocation1 [shape = 'u32[144,128]{1,0:T(1,128)}', space=vmem, size = 0x12000, scoped, tag = 'internal scratch']
  %s0 = inlined_call_operand.hbm [shape: f32[8,23], index: 0, kind: input, shape index: {}]
  %s1 = inlined_call_operand.hbm [shape: f32[8,23], index: 1, kind: input, shape index: {}]
  %s2 = inlined_call_operand.vmem [shape: f32[1,23], index: 2, kind: input, shape index: {}]
  %s3 = inlined_call_operand.hbm [shape: f32[1,1,23], index: 3, kind: output, shape index: {}]
  %s4 = sld [smem:[#allocation0]]
  $region30: #{tpu_custom_call.1} parent=0
    _
  %s6 = ssub.s32 1, %s4
  %s7 = scalar_select 0, %s6, %s4
  $region1: #{tpu_custom_call.1} parent=0
    #allocation2 [shape = 'u8[4096]{0}', space=vmem, size = 0x1000, scoped, tag = 'input window, operand 0, single buffered']
    #allocation3 [shape = 's32[1]{0}', space=sflag, size = 0x4, scoped, tag = 'scoped memory for tpu_custom_call.1']
    #allocation4 [shape = 's32[1]{0}', space=sflag, size = 0x4, scoped, tag = 'scoped memory for tpu_custom_call.1']
    #allocation5 [shape = 'u8[4096]{0}', space=vmem, size = 0x1000, scoped, tag = 'input window, operand 1, single buffered']
    #allocation6 [shape = 's32[1]{0}', space=sflag, size = 0x4, scoped, tag = 'scoped memory for tpu_custom_call.1']
    #allocation7 [shape = 'u8[512]{0}', space=vmem, size = 0x400, scoped, tag = 'output window, operand 0, single buffered']
    %8 = vsyncpa [#allocation3], 0
    %9 = vsyncpa [#allocation6], 0
    %10 = vsyncpa [#allocation4], 0
    // Predicated region
    $region2: #{tpu_custom_call.1} parent=1 // pred_check
      _
    $region3: #{tpu_custom_call.1} parent=1 // pred_check_branch
      %12 = sbr.rel (0) target = $region5
    $region4: #{tpu_custom_call.1} parent=1 // pred_region
      %s14 = ssub.s32 128, 128
      %15 = vsyncadd [#allocation3], %s14
      %s17 = sshll.u32 [#allocation2], 4
      %s18 = int_to_ptr.vmem [resolvable:$true] %s17
      %20 = dma.hbm_to_vmem [thread:$0]  %s0, 128, %s18, [#allocation3]
    $region5: #{tpu_custom_call.1} parent=1 // pred_fallthru
      _
    // Predicated region
    $region6: #{tpu_custom_call.1} parent=1 // pred_check
      _
    $region7: #{tpu_custom_call.1} parent=1 // pred_check_branch
      %22 = sbr.rel (0) target = $region9
    $region8: #{tpu_custom_call.1} parent=1 // pred_region
      %s24 = ssub.s32 128, 128
      %25 = vsyncadd [#allocation6], %s24
      %s27 = sshll.u32 [#allocation5], 4
      %s28 = int_to_ptr.vmem [resolvable:$true] %s27
      %30 = dma.hbm_to_vmem [thread:$0]  %s1, 128, %s28, [#allocation6]
    $region9: #{tpu_custom_call.1} parent=1 // pred_fallthru
      _
    // Predicated region
    $region10: #{tpu_custom_call.1} parent=1 // pred_check
      _
    $region11: #{tpu_custom_call.1} parent=1 // pred_check_branch
      %32 = sbr.rel (0) target = $region13
    $region12: #{tpu_custom_call.1} parent=1 // pred_region
      _
    $region13: #{tpu_custom_call.1} parent=1 // pred_fallthru
      _
    // Predicated region
    $region14: #{tpu_custom_call.1} parent=1 // pred_check
      _
    $region15: #{tpu_custom_call.1} parent=1 // pred_check_branch
      %34 = sbr.rel (0) target = $region17
    $region16: #{tpu_custom_call.1} parent=1 // pred_region
      %35 = dma.done [#allocation3], 128
    $region17: #{tpu_custom_call.1} parent=1 // pred_fallthru
      _
    // Predicated region
    $region18: #{tpu_custom_call.1} parent=1 // pred_check
      _
    $region19: #{tpu_custom_call.1} parent=1 // pred_check_branch
      %37 = sbr.rel (0) target = $region21
    $region20: #{tpu_custom_call.1} parent=1 // pred_region
      %38 = dma.done [#allocation6], 128
    $region21: #{tpu_custom_call.1} parent=1 // pred_fallthru
      _
    %v39 = vld [vmem:[#allocation2] sm:$0xff]
    %v40 = vld [vmem:[#allocation5] sm:$0xff]
    %v41 = vld [vmem:[%s2] sm:$0x1]
    %v42 = vsub.f32 0.0, %v39
    %v43 = vmax.f32 %v42, 0.0
    %v44 = vand.u32 2147483647, %v39
    %v45 = vsub.f32 0.0, %v44
    %v46 = vmul.f32 %v45, 1.442695
    %v47 = vpow.pop %v46
    %v48 = vadd.f32 %v47, 1.0
    %v49 = vlog2.pop %v48
    %v50 = vmul.f32 %v49, 0.6931472
    %v51 = vmul.f32 -0.5, %v47
    %v52 = vadd.f32 %v51, 1.0
    %v53 = vmul.f32 %v52, %v47
    %v54 = vand.u32 2147483647, %v47
    %vm55 = vcmp.lt.f32.partialorder %v54, 0.0004427343
    %v56 = vsel %vm55, %v53, %v50
    %v57 = vadd.f32 %v43, %v56
    %v58 = vsub.f32 1.0, %v40
    %v59 = vmul.f32 %v58, %v39
    %v60 = vsub.f32 %v41, 1.0
    %v62 = vlaneseq
    %v63 = vshrl.u32 %v62, 7
    %v64 = vsub.s32 0, %v63
    %v65 = vrot.slane %v60, %v64
    %v67 = vmul.f32 %v65, %v40
    %v68 = vadd.f32 %v67, 1.0
    %v69 = vmul.f32 %v68, %v57
    %v70 = vadd.f32 %v59, %v69
    %vm71 = vcmask 187392
    %v72 = vsel %vm71, %v70, 0.0
    %v73 = vrot.slane %v72, 4
    %v74 = vadd.f32 %v72, %v73
    %v75 = vrot.slane %v74, 2
    %v76 = vadd.f32 %v74, %v75
    %v77 = vrot.slane %v76, 1
    %v78 = vadd.f32 %v76, %v77
    %vm79 = vcmask 180224
    %80 = vst.msk [vmem:[#allocation7] sm:$0x1] %vm79, %v78
    // Predicated region
    $region22: #{tpu_custom_call.1} parent=1 // pred_check
      _
    $region23: #{tpu_custom_call.1} parent=1 // pred_check_branch
      %82 = sbr.rel (0) target = $region25
    $region24: #{tpu_custom_call.1} parent=1 // pred_region
      %s84 = ssub.s32 16, 16
      %85 = vsyncadd [#allocation4], %s84
      %s87 = sshll.u32 [#allocation7], 4
      %s88 = int_to_ptr.vmem [resolvable:$true] %s87
      %90 = dma.vmem_to_hbm [thread:$0]  %s88, 16, %s3, [#allocation4]
    $region25: #{tpu_custom_call.1} parent=1 // pred_fallthru
      _
    // Predicated region
    $region26: #{tpu_custom_call.1} parent=1 // pred_check
      _
    $region27: #{tpu_custom_call.1} parent=1 // pred_check_branch
      %92 = sbr.rel (0) target = $region29
    $region28: #{tpu_custom_call.1} parent=1 // pred_region
      %93 = dma.done [#allocation4], 16
    $region29: #{tpu_custom_call.1} parent=1 // pred_fallthru
      _
    %94 = vsyncpa [#allocation3], 1
    %95 = vsyncpa [#allocation6], 1
    %96 = vsyncpa [#allocation4], 1

</llo_original>
